<compile_context>
chip_gen: v7x
topology: tpu7x:2x2x1
jax: 0.10.0
libtpu: 0.0.40
codegen_flags: <defaults>
</compile_context>

<pallas_src>
import jax
import jax.numpy as jnp
from jax.experimental import pallas as pl
from jax.experimental.pallas import tpu as pltpu

_LANE = 128
_SUBLANE = 8


def bm_kernel(x_ref, w1_ref, b1_ref, w2_ref, b2_ref, o_ref):
    # fc1: Linear(1, C) is a K=1 contraction -> pure VPU broadcast multiply;
    # no MXU push/pop for zero-FLOP work.
    h = x_ref[...] * w1_ref[...] + b1_ref[...]        # (TB,1)*(1,Cp)+(1,Cp) -> (TB,Cp)
    h = jnp.maximum(h, 0.0)                           # ReLU on the VPU
    # fc2: the only real matmul -> MXU with f32 accumulation.
    y = jnp.dot(h, w2_ref[...], preferred_element_type=jnp.float32)
    y = y + b2_ref[...]
    o_ref[...] = jnp.exp(y)                           # exp on the EUP


def _round_up(n, m):
    return ((n + m - 1) // m) * m


def bm_forward(x, w1, b1, w2, b2, *, tb=512):
    """x: (B, 1); w1: (1, C); b1: (C,)/(1,C); w2: (C, C) [in x out]; b2: (C,)/(1,C)."""
    B = x.shape[0]
    C = w1.shape[1]
    b1 = b1.reshape(1, C)
    b2 = b2.reshape(1, C)

    # Lane-dense feature axis: pad C to a multiple of 128 so every store is a
    # full-lane vst instead of a masked partial store.
    Cp = _round_up(C, _LANE)
    # Row tile: multiple of the 8-row sublane, capped at `tb`; pad B to a whole
    # number of tiles so the grid is exact.
    TB = min(_round_up(B, _SUBLANE), _round_up(tb, _SUBLANE))
    Bp = _round_up(B, TB)

    f32 = jnp.float32
    xp = jnp.zeros((Bp, 1), f32).at[:B, :].set(x.astype(f32))
    w1p = jnp.zeros((1, Cp), f32).at[:, :C].set(w1.astype(f32))
    b1p = jnp.zeros((1, Cp), f32).at[:, :C].set(b1.astype(f32))
    w2p = jnp.zeros((Cp, Cp), f32).at[:C, :C].set(w2.astype(f32))
    b2p = jnp.zeros((1, Cp), f32).at[:, :C].set(b2.astype(f32))
    # Padded lanes: h_pad = relu(0) = 0, w2/b2 pad = 0, so out_pad = exp(0) = 1;
    # those lanes (and padded rows) are sliced off before returning.

    grid = (Bp // TB,)
    const = lambda shape: pl.BlockSpec(shape, lambda i: (0, 0))

    out = pl.pallas_call(
        bm_kernel,
        out_shape=jax.ShapeDtypeStruct((Bp, Cp), f32),
        grid=grid,
        in_specs=[
            pl.BlockSpec((TB, 1), lambda i: (i, 0)),   # x streams over the grid
            const((1, Cp)),                            # weights / biases stay resident
            const((1, Cp)),
            const((Cp, Cp)),
            const((1, Cp)),
        ],
        out_specs=pl.BlockSpec((TB, Cp), lambda i: (i, 0)),
        compiler_params=pltpu.CompilerParams(
            dimension_semantics=("parallel",),         # shard B across TCs on v7x
        ),
    )(xp, w1p, b1p, w2p, b2p)

    return out[:B, :C]


if __name__ == "__main__":
    B = 16         # batch (rows)
    C = 32         # channels

    key = jax.random.PRNGKey(0)
    kx, k1, kb1, k2, kb2 = jax.random.split(key, 5)

    # Input: last dim 1, as required by fc1 = Linear(1, C)
    x = jax.random.normal(kx, (B, 1), dtype=jnp.float32)

    # Deterministic synthetic parameters (Linear-shaped, stored transposed):
    w1 = jax.random.normal(k1, (1, C), dtype=jnp.float32) * 0.5
    b1 = jax.random.normal(kb1, (C,), dtype=jnp.float32) * 0.1
    w2 = jax.random.normal(k2, (C, C), dtype=jnp.float32) * (1.0 / jnp.sqrt(C))
    b2 = jax.random.normal(kb2, (C,), dtype=jnp.float32) * 0.1

    # tb=8 forces a 2-step grid even at this toy B, exercising the streaming path.
    out = bm_forward(x, w1, b1, w2, b2, tb=8)
    out = jax.block_until_ready(out)

    # Reference in plain JAX (same math as the PyTorch module).
    ref = jnp.exp(jnp.maximum(x @ w1 + b1[None, :], 0.0) @ w2 + b2[None, :])
    assert out.shape == (B, C)
    assert jnp.allclose(out, ref, rtol=1e-5, atol=1e-5)

    print("KERNEL_OK")
</pallas_src>

<mosaic_0001>
module attributes {stable_mosaic.version = 11 : i64} {
  func.func @bm_kernel(%arg0: i32, %arg1: memref<8x1xf32, #tpu.memory_space<vmem>>, %arg2: memref<1x128xf32, #tpu.memory_space<vmem>>, %arg3: memref<1x128xf32, #tpu.memory_space<vmem>>, %arg4: memref<128x128xf32, #tpu.memory_space<vmem>>, %arg5: memref<1x128xf32, #tpu.memory_space<vmem>>, %arg6: memref<8x128xf32, #tpu.memory_space<vmem>>) attributes {dimension_semantics = [#tpu.dimension_semantics<parallel>], iteration_bounds = array<i64: 2>, scalar_prefetch = 0 : i64, scratch_operands = 0 : i64, tpu.core_type = #tpu.core_type<tc>, window_params = [{transform_indices = @transform_0, window_bounds = array<i64: 8, 1>}, {pipeline_mode = #tpu.pipeline_mode<synchronous>, transform_indices = @transform_1, window_bounds = array<i64: 1, 128>}, {pipeline_mode = #tpu.pipeline_mode<synchronous>, transform_indices = @transform_2, window_bounds = array<i64: 1, 128>}, {pipeline_mode = #tpu.pipeline_mode<synchronous>, transform_indices = @transform_3, window_bounds = array<i64: 128, 128>}, {pipeline_mode = #tpu.pipeline_mode<synchronous>, transform_indices = @transform_4, window_bounds = array<i64: 1, 128>}, {transform_indices = @transform_5, window_bounds = array<i64: 8, 128>}]} {
    %c0 = arith.constant 0 : index
    %c0_0 = arith.constant 0 : index
    %0 = vector.load %arg1[%c0, %c0_0] : memref<8x1xf32, #tpu.memory_space<vmem>>, vector<8x1xf32>
    %c0_1 = arith.constant 0 : index
    %c0_2 = arith.constant 0 : index
    %1 = vector.load %arg2[%c0_1, %c0_2] : memref<1x128xf32, #tpu.memory_space<vmem>>, vector<1x128xf32>
    %2 = vector.broadcast %0 : vector<8x1xf32> to vector<8x128xf32>
    %3 = vector.broadcast %1 : vector<1x128xf32> to vector<8x128xf32>
    %4 = arith.mulf %2, %3 : vector<8x128xf32>
    %c0_3 = arith.constant 0 : index
    %c0_4 = arith.constant 0 : index
    %5 = vector.load %arg3[%c0_3, %c0_4] : memref<1x128xf32, #tpu.memory_space<vmem>>, vector<1x128xf32>
    %6 = vector.broadcast %5 : vector<1x128xf32> to vector<8x128xf32>
    %7 = arith.addf %4, %6 : vector<8x128xf32>
    %cst = arith.constant 0.000000e+00 : f32
    %8 = vector.broadcast %cst : f32 to vector<8x128xf32>
    %9 = arith.maximumf %7, %8 : vector<8x128xf32>
    %c0_5 = arith.constant 0 : index
    %c0_6 = arith.constant 0 : index
    %10 = vector.load %arg4[%c0_5, %c0_6] : memref<128x128xf32, #tpu.memory_space<vmem>>, vector<128x128xf32>
    %cst_7 = arith.constant dense<0.000000e+00> : vector<8x128xf32>
    %11 = tpu.matmul %9, %10, %cst_7 {dimension_numbers = #tpu.dot_dimension_numbers<[1], [0], [0], [1], [0, 0, 1, 1], [], []>} : vector<8x128xf32>, vector<128x128xf32>, vector<8x128xf32> -> vector<8x128xf32>
    %c0_8 = arith.constant 0 : index
    %c0_9 = arith.constant 0 : index
    %12 = vector.load %arg5[%c0_8, %c0_9] : memref<1x128xf32, #tpu.memory_space<vmem>>, vector<1x128xf32>
    %13 = vector.broadcast %12 : vector<1x128xf32> to vector<8x128xf32>
    %14 = arith.addf %11, %13 : vector<8x128xf32>
    %15 = math.exp %14 : vector<8x128xf32>
    %c0_10 = arith.constant 0 : index
    %c0_11 = arith.constant 0 : index
    %16 = vector.load %arg6[%c0_10, %c0_11] : memref<8x128xf32, #tpu.memory_space<vmem>>, vector<8x128xf32>
    tpu.vector_store %arg6[%c0_10, %c0_11], %15 {strides = array<i32>} : memref<8x128xf32, #tpu.memory_space<vmem>>, vector<8x128xf32>,
    return
  }
  func.func @transform_0(%arg0: i32) -> (i32, i32) {
    %c0_i32 = arith.constant 0 : i32
    %c0_i32_0 = arith.constant 0 : i32
    return %arg0, %c0_i32 : i32, i32
  }
  func.func @transform_1(%arg0: i32) -> (i32, i32) {
    %c0_i32 = arith.constant 0 : i32
    %c0_i32_0 = arith.constant 0 : i32
    %c0_i32_1 = arith.constant 0 : i32
    return %c0_i32, %c0_i32_0 : i32, i32
  }
  func.func @transform_2(%arg0: i32) -> (i32, i32) {
    %c0_i32 = arith.constant 0 : i32
    %c0_i32_0 = arith.constant 0 : i32
    %c0_i32_1 = arith.constant 0 : i32
    return %c0_i32, %c0_i32_0 : i32, i32
  }
  func.func @transform_3(%arg0: i32) -> (i32, i32) {
    %c0_i32 = arith.constant 0 : i32
    %c0_i32_0 = arith.constant 0 : i32
    %c0_i32_1 = arith.constant 0 : i32
    return %c0_i32, %c0_i32_0 : i32, i32
  }
  func.func @transform_4(%arg0: i32) -> (i32, i32) {
    %c0_i32 = arith.constant 0 : i32
    %c0_i32_0 = arith.constant 0 : i32
    %c0_i32_1 = arith.constant 0 : i32
    return %c0_i32, %c0_i32_0 : i32, i32
  }
  func.func @transform_5(%arg0: i32) -> (i32, i32) {
    %c0_i32 = arith.constant 0 : i32
    %c0_i32_0 = arith.constant 0 : i32
    return %arg0, %c0_i32 : i32, i32
  }
}

</mosaic_0001>

<llo_original>
// kernel: tpu_custom_call.1
$region0: #{tpu_custom_call.1}
  #allocation0 [shape = 'u32[]', space=smem, size = 0x4, offset = 0x4, fixed_abs, tag = 'smem constant byte address 0x4 - core index']
  #allocation1 [shape = 'u32[144,128]{1,0:T(1,128)}', space=vmem, size = 0x12000, scoped, tag = 'internal scratch']
  %s0 = inlined_call_operand.vmem [shape: f32[16,1], index: 0, kind: input, shape index: {}]
  %s1 = inlined_call_operand.vmem [shape: f32[1,128], index: 1, kind: input, shape index: {}]
  %s2 = inlined_call_operand.vmem [shape: f32[1,128], index: 2, kind: input, shape index: {}]
  %s3 = inlined_call_operand.hbm [shape: f32[128,128], index: 3, kind: input, shape index: {}]
  %s4 = inlined_call_operand.vmem [shape: f32[1,128], index: 4, kind: input, shape index: {}]
  %s5 = inlined_call_operand.hbm [shape: f32[16,128], index: 5, kind: output, shape index: {}]
  %s6 = sld [smem:[#allocation0]]
  $region57: #{tpu_custom_call.1} parent=0
    _
  %s8 = ssub.s32 1, %s6
  %s9 = scalar_select 0, %s8, %s6
  $region1: #{tpu_custom_call.1} parent=0
    #allocation2 [shape = 'u8[65536]{0}', space=vmem, size = 0x10000, scoped, tag = 'input window, operand 3, single buffered']
    #allocation3 [shape = 's32[2]{0}', space=sflag, size = 0x8, scoped, tag = 'scoped memory for tpu_custom_call.1']
    #allocation4 [shape = 's32[2]{0}', space=sflag, size = 0x8, scoped, tag = 'scoped memory for tpu_custom_call.1']
    #allocation5 [shape = 'u8[8192]{0}', space=vmem, size = 0x2000, scoped, tag = 'output window, operand 0']
    %10 = vsyncpa [#allocation3], 0
    %11 = vsyncpa [#allocation4], 0
    %s12 = scalar_lea.sflag [#allocation4], 1
    %13 = vsyncpa %s12, 0
    loop: start=0, step=1, limit=4
    $region2: #{tpu_custom_call.1} parent=1 // loop_pre_header
      _
    $region3: #{tpu_custom_call.1} parent=1 // loop_header
      %s15 = sphi 0, %s19
      %p16 = scmp.ge.s32.totalorder %s15, 4
      %s25 = sphi 0, %s27
      %s28 = sphi 0, %s25
      %s29 = sphi 0, %s28
      %s45 = sphi 0, %s29
      %s49 = sphi 0, %s49
      %s51 = sphi 0, %s49
      %s52 = sphi 0, %s51
      %s66 = sphi 0, %s52
      %s70 = sphi 0, %s70
      %s72 = sphi 0, %s70
      %s73 = sphi 0, %s72
      %s87 = sphi 0, %s73
      %s91 = sphi 0, %s91
      %s93 = sphi 0, %s91
      %s94 = sphi 0, %s93
      %s108 = sphi 0, %s94
      %s112 = sphi 0, %s112
      %s114 = sphi 0, %s112
      %s115 = sphi 0, %s114
      %s129 = sphi 0, %s115
      %s135 = sphi 0, %s137
      %s138 = sphi 0, %s135
      %s139 = sphi 0, %s138
      %s155 = sphi 0, %s139
    $region4: #{tpu_custom_call.1} parent=1 // loop_header_branch
      %18 = sbr.rel (%p16) target = $region8
    $region5: #{tpu_custom_call.1} parent=1 // loop_body
      %s20 = ssub.s32 %s15, 1
      %s21 = ssub.s32 %s15, 2
      %s22 = sadd.s32 %s15, 1
      %s23 = ssub.s32 %s15, %s22
      %p24 = scmp.eq.s32.totalorder %s23, 0
      %s26 = sadd.s32 %s25, 1
      %s27 = scalar_select %p24, %s25, %s26
      %p30 = pneg %p24
      %p31 = scmp.eq.s32.totalorder %s15, 1
      %p32 = por %p30, %p31
      %p33 = scmp.ne.s32.totalorder %s25, %s28
      %p34 = scmp.eq.s32.totalorder %s15, 0
      %p35 = por %p33, %p34
      %p36 = scmp.ne.s32.totalorder %s25, %s28
      %p37 = scmp.eq.s32.totalorder %s20, 1
      %p38 = por %p36, %p37
      %p39 = scmp.ne.s32.totalorder %s28, %s29
      %p40 = scmp.eq.s32.totalorder %s20, 0
      %p41 = por %p39, %p40
      %p42 = scmp.ne.s32.totalorder %s28, %s29
      %p43 = scmp.eq.s32.totalorder %s21, 1
      %p44 = por %p42, %p43
      %p46 = scmp.ne.s32.totalorder %s29, %s45
      %p47 = scmp.eq.s32.totalorder %s21, 0
      %p48 = por %p46, %p47
      %s50 = sadd.s32 %s49, 1
      %p53 = scmp.eq.s32.totalorder %s15, 1
      %p54 = scmp.ne.s32.totalorder %s49, %s51
      %p55 = scmp.eq.s32.totalorder %s15, 0
      %p56 = por %p54, %p55
      %p57 = scmp.ne.s32.totalorder %s49, %s51
      %p58 = scmp.eq.s32.totalorder %s20, 1
      %p59 = por %p57, %p58
      %p60 = scmp.ne.s32.totalorder %s51, %s52
      %p61 = scmp.eq.s32.totalorder %s20, 0
      %p62 = por %p60, %p61
      %p63 = scmp.ne.s32.totalorder %s51, %s52
      %p64 = scmp.eq.s32.totalorder %s21, 1
      %p65 = por %p63, %p64
      %p67 = scmp.ne.s32.totalorder %s52, %s66
      %p68 = scmp.eq.s32.totalorder %s21, 0
      %p69 = por %p67, %p68
      %s71 = sadd.s32 %s70, 1
      %p74 = scmp.eq.s32.totalorder %s15, 1
      %p75 = scmp.ne.s32.totalorder %s70, %s72
      %p76 = scmp.eq.s32.totalorder %s15, 0
      %p77 = por %p75, %p76
      %p78 = scmp.ne.s32.totalorder %s70, %s72
      %p79 = scmp.eq.s32.totalorder %s20, 1
      %p80 = por %p78, %p79
      %p81 = scmp.ne.s32.totalorder %s72, %s73
      %p82 = scmp.eq.s32.totalorder %s20, 0
      %p83 = por %p81, %p82
      %p84 = scmp.ne.s32.totalorder %s72, %s73
      %p85 = scmp.eq.s32.totalorder %s21, 1
      %p86 = por %p84, %p85
      %p88 = scmp.ne.s32.totalorder %s73, %s87
      %p89 = scmp.eq.s32.totalorder %s21, 0
      %p90 = por %p88, %p89
      %s92 = sadd.s32 %s91, 1
      %p95 = scmp.eq.s32.totalorder %s15, 1
      %p96 = scmp.ne.s32.totalorder %s91, %s93
      %p97 = scmp.eq.s32.totalorder %s15, 0
      %p98 = por %p96, %p97
      %p99 = scmp.ne.s32.totalorder %s91, %s93
      %p100 = scmp.eq.s32.totalorder %s20, 1
      %p101 = por %p99, %p100
      %p102 = scmp.ne.s32.totalorder %s93, %s94
      %p103 = scmp.eq.s32.totalorder %s20, 0
      %p104 = por %p102, %p103
      %p105 = scmp.ne.s32.totalorder %s93, %s94
      %p106 = scmp.eq.s32.totalorder %s21, 1
      %p107 = por %p105, %p106
      %p109 = scmp.ne.s32.totalorder %s94, %s108
      %p110 = scmp.eq.s32.totalorder %s21, 0
      %p111 = por %p109, %p110
      %s113 = sadd.s32 %s112, 1
      %p116 = scmp.eq.s32.totalorder %s15, 1
      %p117 = scmp.ne.s32.totalorder %s112, %s114
      %p118 = scmp.eq.s32.totalorder %s15, 0
      %p119 = por %p117, %p118
      %p120 = scmp.ne.s32.totalorder %s112, %s114
      %p121 = scmp.eq.s32.totalorder %s20, 1
      %p122 = por %p120, %p121
      %p123 = scmp.ne.s32.totalorder %s114, %s115
      %p124 = scmp.eq.s32.totalorder %s20, 0
      %p125 = por %p123, %p124
      %p126 = scmp.ne.s32.totalorder %s114, %s115
      %p127 = scmp.eq.s32.totalorder %s21, 1
      %p128 = por %p126, %p127
      %p130 = scmp.ne.s32.totalorder %s115, %s129
      %p131 = scmp.eq.s32.totalorder %s21, 0
      %p132 = por %p130, %p131
      %s133 = ssub.s32 %s15, %s22
      %p134 = scmp.eq.s32.totalorder %s133, 0
      %s136 = sadd.s32 %s135, 1
      %s137 = scalar_select %p134, %s135, %s136
      %p140 = pneg %p134
      %p141 = scmp.eq.s32.totalorder %s15, 1
      %p142 = por %p140, %p141
      %p143 = scmp.ne.s32.totalorder %s135, %s138
      %p144 = scmp.eq.s32.totalorder %s15, 0
      %p145 = por %p143, %p144
      %p146 = scmp.ne.s32.totalorder %s135, %s138
      %p147 = scmp.eq.s32.totalorder %s20, 1
      %p148 = por %p146, %p147
      %p149 = scmp.ne.s32.totalorder %s138, %s139
      %p150 = scmp.eq.s32.totalorder %s20, 0
      %p151 = por %p149, %p150
      %p152 = scmp.ne.s32.totalorder %s138, %s139
      %p153 = scmp.eq.s32.totalorder %s21, 1
      %p154 = por %p152, %p153
      %p156 = scmp.ne.s32.totalorder %s139, %s155
      %p157 = scmp.eq.s32.totalorder %s21, 0
      %p158 = por %p156, %p157
      %p159 = scmp.le.s32.totalorder 1, %s15
      %p160 = scmp.lt.s32.totalorder %s15, 3
      %p161 = pnand %p159, %p160
      %p162 = pneg %p161
      // Predicated region
      $region9: #{tpu_custom_call.1} parent=5 // pred_check
        _
      $region10: #{tpu_custom_call.1} parent=5 // pred_check_branch
        %164 = sbr.rel (%p161) target = $region12
      $region11: #{tpu_custom_call.1} parent=5 // pred_region
        %s165 = ssub.s32 %s15, 1
        // Predicated region
        $region13: #{tpu_custom_call.1} parent=11 // pred_check
          %p166 = pneg %p62
        $region14: #{tpu_custom_call.1} parent=11 // pred_check_branch
          %168 = sbr.rel (%p166) target = $region16
        $region15: #{tpu_custom_call.1} parent=11 // pred_region
          _
        $region16: #{tpu_custom_call.1} parent=11 // pred_fallthru
          _
        // Predicated region
        $region17: #{tpu_custom_call.1} parent=11 // pred_check
          %p169 = pneg %p83
        $region18: #{tpu_custom_call.1} parent=11 // pred_check_branch
          %171 = sbr.rel (%p169) target = $region20
        $region19: #{tpu_custom_call.1} parent=11 // pred_region
          _
        $region20: #{tpu_custom_call.1} parent=11 // pred_fallthru
          _
        // Predicated region
        $region21: #{tpu_custom_call.1} parent=11 // pred_check
          %p172 = pneg %p104
        $region22: #{tpu_custom_call.1} parent=11 // pred_check_branch
          %174 = sbr.rel (%p172) target = $region24
        $region23: #{tpu_custom_call.1} parent=11 // pred_region
          %s176 = ssub.s32 2048, 2048
          %177 = vsyncadd [#allocation3], %s176
          %s178 = sshll.u32 [#allocation2], 4
          %s179 = int_to_ptr.vmem [resolvable:$true] %s178
          %184 = dma.hbm_to_vmem [thread:$0]  %s3, 2048, %s179, [#allocation3], 128, 128, 8
        $region24: #{tpu_custom_call.1} parent=11 // pred_fallthru
          _
        // Predicated region
        $region25: #{tpu_custom_call.1} parent=11 // pred_check
          %p185 = pneg %p125
        $region26: #{tpu_custom_call.1} parent=11 // pred_check_branch
          %187 = sbr.rel (%p185) target = $region28
        $region27: #{tpu_custom_call.1} parent=11 // pred_region
          _
        $region28: #{tpu_custom_call.1} parent=11 // pred_fallthru
          _
      $region12: #{tpu_custom_call.1} parent=5 // pred_fallthru
        _
      %p188 = scmp.lt.s32.totalorder %s15, 2
      // Predicated region
      $region29: #{tpu_custom_call.1} parent=5 // pred_check
        %p189 = pneg %p188
      $region30: #{tpu_custom_call.1} parent=5 // pred_check_branch
        %191 = sbr.rel (%p189) target = $region32
      $region31: #{tpu_custom_call.1} parent=5 // pred_region
        // Predicated region
        $region33: #{tpu_custom_call.1} parent=31 // pred_check
          %p192 = pneg %p35
        $region34: #{tpu_custom_call.1} parent=31 // pred_check_branch
          %194 = sbr.rel (%p192) target = $region36
        $region35: #{tpu_custom_call.1} parent=31 // pred_region
          %p195 = scmp.lt.s32.totalorder %s15, 1
          %s196 = scalar_select %p195, %s15, 1
          %s197 = smul.addr %s196, 8
          %s198 = scalar_lea.vmem %s0, %s197
        $region36: #{tpu_custom_call.1} parent=31 // pred_fallthru
          _
      $region32: #{tpu_custom_call.1} parent=5 // pred_fallthru
        _
      %p199 = scmp.le.s32.totalorder 1, %s15
      %p200 = scmp.lt.s32.totalorder %s15, 3
      %p201 = pnand %p199, %p200
      %p202 = pneg %p201
      // Predicated region
      $region37: #{tpu_custom_call.1} parent=5 // pred_check
        _
      $region38: #{tpu_custom_call.1} parent=5 // pred_check_branch
        %204 = sbr.rel (%p201) target = $region40
      $region39: #{tpu_custom_call.1} parent=5 // pred_region
        %s205 = ssub.s32 %s15, 1
        // Predicated region
        $region41: #{tpu_custom_call.1} parent=39 // pred_check
          %p206 = pneg %p104
        $region42: #{tpu_custom_call.1} parent=39 // pred_check_branch
          %208 = sbr.rel (%p206) target = $region44
        $region43: #{tpu_custom_call.1} parent=39 // pred_region
          %209 = dma.done [#allocation3], 2048
        $region44: #{tpu_custom_call.1} parent=39 // pred_fallthru
          _
        %p210 = scmp.lt.s32.totalorder %s20, 1
        %s211 = scalar_select %p210, %s20, 1
        %s212 = smul.addr %s211, 8
        %s213 = scalar_lea.vmem %s0, %s212
        %p214 = pneg %p41
        %p215 = pneg %p38
        %p216 = pneg %p62
        %p217 = pneg %p59
        %p218 = pneg %p83
        %p219 = pneg %p80
        %p220 = pneg %p104
        %p221 = pneg %p101
        %p222 = pneg %p125
        %p223 = pneg %p122
        %p224 = pneg %p151
        %p225 = pneg %p148
        %s226 = sand.u32 %s138, 1
        %s227 = scalar_lea.sflag [#allocation4], %s226
        %s228 = sand.u32 %s138, 1
        %s229 = smul.addr %s228, 8
        %s230 = scalar_lea.vmem [#allocation5], %s229
        %p231 = scmp.lt.s32.totalorder %s20, 1
        %s232 = scalar_select %p231, %s20, 1
        %s233 = smul.addr %s232, 8
        %s234 = scalar_lea.vmem %s0, %s233
        %v235 = vld [vmem:[%s234] sm:$0xff]
        %v236 = vld [vmem:[%s1] sm:$0x1]
        %238 = vset.pattern.permute.xlu0 0
        %239 = vperm.xlu0 %238, %v235
        %v240 = vpop.permute.xlu0 %239
        %v243 = vlaneseq
        %v244 = vshrl.u32 %v243, 7
        %v245 = vsub.s32 0, %v244
        %v246 = vrot.slane %v236, %v245
        %v248 = vmul.f32 %v240, %v246
        %v249 = vld [vmem:[%s2] sm:$0x1]
        %v251 = vlaneseq
        %v252 = vshrl.u32 %v251, 7
        %v253 = vsub.s32 0, %v252
        %v254 = vrot.slane %v249, %v253
        %v256 = vadd.f32 %v248, %v254
        %v257 = vmax.f32 %v256, 0.0
        %v258 = vld [vmem:[#allocation2] sm:$0xff]
        %v259 = vld [vmem:[#allocation2 + $0x8] sm:$0xff]
        %v260 = vld [vmem:[#allocation2 + $0x10] sm:$0xff]
        %v261 = vld [vmem:[#allocation2 + $0x18] sm:$0xff]
        %v262 = vld [vmem:[#allocation2 + $0x20] sm:$0xff]
        %v263 = vld [vmem:[#allocation2 + $0x28] sm:$0xff]
        %v264 = vld [vmem:[#allocation2 + $0x30] sm:$0xff]
        %v265 = vld [vmem:[#allocation2 + $0x38] sm:$0xff]
        %v266 = vld [vmem:[#allocation2 + $0x40] sm:$0xff]
        %v267 = vld [vmem:[#allocation2 + $0x48] sm:$0xff]
        %v268 = vld [vmem:[#allocation2 + $0x50] sm:$0xff]
        %v269 = vld [vmem:[#allocation2 + $0x58] sm:$0xff]
        %v270 = vld [vmem:[#allocation2 + $0x60] sm:$0xff]
        %v271 = vld [vmem:[#allocation2 + $0x68] sm:$0xff]
        %v272 = vld [vmem:[#allocation2 + $0x70] sm:$0xff]
        %v273 = vld [vmem:[#allocation2 + $0x78] sm:$0xff]
        %v274 = vld [vmem:[%s4] sm:$0x1]
        %v276 = vlaneseq
        %v277 = vshrl.u32 %v276, 7
        %v278 = vsub.s32 0, %v277
        %v279 = vrot.slane %v274, %v278
        %281 = vmatprep.subr.mxu0 0.0
        %282 = vmatpush1.msra.mxu0 %v258
        %283 = vmatprep.subr.mxu0 0.0
        %284 = vmatpush1.msra.mxu0 %v259
        %285 = vmatprep.subr.mxu0 0.0
        %286 = vmatpush1.msra.mxu0 %v260
        %287 = vmatprep.subr.mxu0 0.0
        %288 = vmatpush1.msra.mxu0 %v261
        %289 = vmatprep.subr.mxu0 0.0
        %290 = vmatpush1.msra.mxu0 %v262
        %291 = vmatprep.subr.mxu0 0.0
        %292 = vmatpush1.msra.mxu0 %v263
        %293 = vmatprep.subr.mxu0 0.0
        %294 = vmatpush1.msra.mxu0 %v264
        %295 = vmatprep.subr.mxu0 0.0
        %296 = vmatpush1.msra.mxu0 %v265
        %297 = vmatprep.subr.mxu0 0.0
        %298 = vmatpush1.msra.mxu0 %v266
        %299 = vmatprep.subr.mxu0 0.0
        %300 = vmatpush1.msra.mxu0 %v267
        %301 = vmatprep.subr.mxu0 0.0
        %302 = vmatpush1.msra.mxu0 %v268
        %303 = vmatprep.subr.mxu0 0.0
        %304 = vmatpush1.msra.mxu0 %v269
        %305 = vmatprep.subr.mxu0 0.0
        %306 = vmatpush1.msra.mxu0 %v270
        %307 = vmatprep.subr.mxu0 0.0
        %308 = vmatpush1.msra.mxu0 %v271
        %309 = vmatprep.subr.mxu0 0.0
        %310 = vmatpush1.msra.mxu0 %v272
        %311 = vmatprep.subr.mxu0 0.0
        %312 = vmatpush1.msra.mxu0 %v273
        %313 = vmatprep.subr.mxu0 0.0
        %314 = vmatpush1.msra.mxu0 0.0
        %315 = vmatprep.subr.mxu0 0.0
        %316 = vmatpush1.msra.mxu0 0.0
        %317 = vmatprep.subr.mxu0 0.0
        %318 = vmatpush1.msra.mxu0 0.0
        %319 = vmatprep.subr.mxu0 0.0
        %320 = vmatpush1.msra.mxu0 0.0
        %321 = vmatprep.subr.mxu0 0.0
        %322 = vmatpush1.msra.mxu0 0.0
        %323 = vmatprep.subr.mxu0 0.0
        %324 = vmatpush1.msra.mxu0 0.0
        %325 = vmatprep.subr.mxu0 0.0
        %326 = vmatpush1.msra.mxu0 0.0
        %327 = vmatprep.subr.mxu0 0.0
        %328 = vmatpush1.msra.mxu0 0.0
        %329 = vmatprep.subr.mxu0 0.0
        %330 = vmatpush1.msra.mxu0 0.0
        %331 = vmatprep.subr.mxu0 0.0
        %332 = vmatpush1.msra.mxu0 0.0
        %333 = vmatprep.subr.mxu0 0.0
        %334 = vmatpush1.msra.mxu0 0.0
        %335 = vmatprep.subr.mxu0 0.0
        %336 = vmatpush1.msra.mxu0 0.0
        %337 = vmatprep.subr.mxu0 0.0
        %338 = vmatpush1.msra.mxu0 0.0
        %339 = vmatprep.subr.mxu0 0.0
        %340 = vmatpush1.msra.mxu0 0.0
        %341 = vmatprep.subr.mxu0 0.0
        %342 = vmatpush1.msra.mxu0 0.0
        %343 = vmatprep.subr.mxu0 0.0
        %344 = vmatpush1.msra.mxu0 0.0
        %345 = vmatprep.mubr.f32.mxu0 0.0
        %346 = vmatmul.mubr.f32.gmra.mrb[0].mxu0 %v257
        %v347 = vpop.f32.mrb[0].mxu0
        %v348 = vadd.f32 %v279, %v347
        %v349 = vpop.f32.mrb[0].mxu0
        %350 = vdwg.mxu0
        %v351 = vmul.f32 %v348, 1.442695
        %v352 = vpow.pop %v351
        %353 = vst [vmem:[%s230] sm:$0xff] %v352
        %s354 = sand.u32 %s138, 1
        %s355 = scalar_lea.sflag [#allocation4], %s354
        %s356 = sand.u32 %s138, 1
        %s357 = smul.addr %s356, 8
        %s358 = scalar_lea.vmem [#allocation5], %s357
        // Predicated region
        $region45: #{tpu_custom_call.1} parent=39 // pred_check
          %p359 = pneg %p148
        $region46: #{tpu_custom_call.1} parent=39 // pred_check_branch
          %361 = sbr.rel (%p359) target = $region48
        $region47: #{tpu_custom_call.1} parent=39 // pred_region
          %s363 = ssub.s32 128, 128
          %364 = vsyncadd %s355, %s363
          %s365 = smul.addr %s20, 128
          %s366 = scalar_lea.hbm %s5, %s365
          %s368 = sshll.u32 %s358, 4
          %s369 = int_to_ptr.vmem [resolvable:$true] %s368
          %371 = dma.vmem_to_hbm [thread:$0]  %s369, 128, %s366, %s355
        $region48: #{tpu_custom_call.1} parent=39 // pred_fallthru
          _
      $region40: #{tpu_custom_call.1} parent=5 // pred_fallthru
        _
      %p372 = scmp.le.s32.totalorder 2, %s15
      // Predicated region
      $region49: #{tpu_custom_call.1} parent=5 // pred_check
        %p373 = pneg %p372
      $region50: #{tpu_custom_call.1} parent=5 // pred_check_branch
        %375 = sbr.rel (%p373) target = $region52
      $region51: #{tpu_custom_call.1} parent=5 // pred_region
        %s376 = ssub.s32 %s15, 2
        // Predicated region
        $region53: #{tpu_custom_call.1} parent=51 // pred_check
          %p377 = pneg %p154
        $region54: #{tpu_custom_call.1} parent=51 // pred_check_branch
          %379 = sbr.rel (%p377) target = $region56
        $region55: #{tpu_custom_call.1} parent=51 // pred_region
          %s380 = sand.u32 %s139, 1
          %s381 = scalar_lea.sflag [#allocation4], %s380
          %s382 = sand.u32 %s139, 1
          %s383 = smul.addr %s382, 8
          %s384 = scalar_lea.vmem [#allocation5], %s383
          %385 = dma.done %s381, 128
        $region56: #{tpu_custom_call.1} parent=51 // pred_fallthru
          _
      $region52: #{tpu_custom_call.1} parent=5 // pred_fallthru
        _
    $region6: #{tpu_custom_call.1} parent=1 // loop_footer
      %s19 = sadd.s32 1, %s15
    $region7: #{tpu_custom_call.1} parent=1 // loop_footer_branch
      %14 = sbr.rel target = $region3
    $region8: #{tpu_custom_call.1} parent=1 // loop_exit
      _
    %386 = vsyncpa [#allocation3], 1
    %s387 = scalar_lea.sflag [#allocation3], 1
    %388 = vsyncpa %s387, 1
    %389 = vsyncpa [#allocation4], 1
    %s390 = scalar_lea.sflag [#allocation4], 1
    %391 = vsyncpa %s390, 1

</llo_original>
